<compile_context>
chip_gen: v5e
topology: v5e:2x2
jax: 0.10.0
libtpu: 0.0.40
codegen_flags: <defaults>
</compile_context>

<pallas_src>
import functools

import jax
import jax.numpy as jnp
from jax.experimental import pallas as pl
from jax.experimental.pallas import tpu as pltpu

LANE = 128      # vreg lane width  (last dim)
SUBLANE = 8     # vreg sublane width (second-to-last dim)


def _round_up(x, m):
    return ((x + m - 1) // m) * m


def _pad2(x, rows, cols):
    return jnp.pad(x, ((0, rows - x.shape[0]), (0, cols - x.shape[1])))


def _full_spec(shape):
    # Whole-array block, single grid point (everything resident in VMEM).
    return pl.BlockSpec(shape, lambda: tuple(0 for _ in shape))


def gin_fused_kernel(a_ref, h_ref, w1_ref, b1_ref, w2_ref, b2_ref,
                     gamma_ref, beta_ref, wp_ref, bp_ref, out_ref,
                     *, num_layers, n_real):
    """All GIN layers + readout fused.

    a_ref : (Np, Np)  bf16 row-normalized adjacency (mean aggregation)
    h_ref : (Np, Dp)  f32  node features, feature dim padded to 128 lanes
    w1/w2 : (L, Dp, Dp) f32, b1/b2/gamma/beta: (L, 1, Dp) f32
    wp    : (Dp, Op) f32, bp: (1, Op) f32, out_ref: (1, Op) f32
    """
    a = a_ref[...]
    h = h_ref[...]
    n_pad, d_pad = h.shape
    inv_n = 1.0 / n_real
    need_mask = n_real != n_pad
    if need_mask:
        # Zero contributions of padded node rows in BN stats / readout.
        row_mask = (jax.lax.broadcasted_iota(jnp.int32, (n_pad, d_pad), 0)
                    < n_real).astype(jnp.float32)

    # num_layers is static -> unrolled; weights stay resident in VMEM.
    for l in range(num_layers):
        # Mean aggregation over in-neighbors: bf16 MXU matmul, f32 accumulate.
        agg = jnp.dot(a, h.astype(jnp.bfloat16),
                      preferred_element_type=jnp.float32)
        pre = h + agg  # (1 + eps) * h + agg with eps = 0 (GINConv default)

        # GIN MLP: Linear -> ReLU -> Linear (weights are tiny, kept f32).
        z1 = jnp.dot(pre, w1_ref[l], preferred_element_type=jnp.float32) + b1_ref[l]
        z1 = jnp.maximum(z1, 0.0)
        z2 = jnp.dot(z1, w2_ref[l], preferred_element_type=jnp.float32) + b2_ref[l]
        if need_mask:
            z2 = z2 * row_mask

        # BatchNorm1d, training-mode batch statistics over the real node axis.
        mu = jnp.sum(z2, axis=0, keepdims=True) * inv_n
        d = z2 - mu
        if need_mask:
            d = d * row_mask
        var = jnp.sum(d * d, axis=0, keepdims=True) * inv_n
        xn = d * jax.lax.rsqrt(var + 1e-5)
        h = jnp.maximum(xn * gamma_ref[l] + beta_ref[l], 0.0)
        if need_mask:
            h = h * row_mask

    # Readout fused into the same kernel: dgl.mean_nodes then linear_pred.
    hg = jnp.sum(h, axis=0, keepdims=True) * inv_n          # (1, Dp)
    out_ref[...] = (jnp.dot(hg, wp_ref[...], preferred_element_type=jnp.float32)
                    + bp_ref[...])


@functools.partial(jax.jit, static_argnames=("num_layers",))
def gin_model_forward(a_norm, features, params, num_layers):
    n, input_dim = features.shape
    hidden_dim = params["layers"][0]["w2"].shape[1]
    output_dim = params["wp"].shape[1]

    n_p = _round_up(n, SUBLANE)
    d_p = _round_up(max(input_dim, hidden_dim), LANE)
    o_p = _round_up(output_dim, LANE)

    # Lane-dense / sublane-aligned padding; adjacency in bf16 halves the
    # dominant O(N^2) operand (values are 1/deg, accumulation stays f32).
    a_p = _pad2(a_norm, n_p, n_p).astype(jnp.bfloat16)
    h_p = _pad2(features, n_p, d_p).astype(jnp.float32)

    layers = params["layers"]
    w1 = jnp.stack([_pad2(p["w1"], d_p, d_p) for p in layers])
    b1 = jnp.stack([_pad2(p["b1"], 1, d_p) for p in layers])
    w2 = jnp.stack([_pad2(p["w2"], d_p, d_p) for p in layers])
    b2 = jnp.stack([_pad2(p["b2"], 1, d_p) for p in layers])
    gamma = jnp.stack([_pad2(p["gamma"], 1, d_p) for p in layers])
    beta = jnp.stack([_pad2(p["beta"], 1, d_p) for p in layers])
    wp = _pad2(params["wp"], d_p, o_p)
    bp = _pad2(params["bp"], 1, o_p)

    kernel = functools.partial(gin_fused_kernel, num_layers=num_layers, n_real=n)

    out_p = pl.pallas_call(
        kernel,
        out_shape=jax.ShapeDtypeStruct((1, o_p), jnp.float32),
        in_specs=[
            _full_spec(a_p.shape), _full_spec(h_p.shape),
            _full_spec(w1.shape), _full_spec(b1.shape),
            _full_spec(w2.shape), _full_spec(b2.shape),
            _full_spec(gamma.shape), _full_spec(beta.shape),
            _full_spec(wp.shape), _full_spec(bp.shape),
        ],
        out_specs=_full_spec((1, o_p)),
        compiler_params=pltpu.CompilerParams(vmem_limit_bytes=32 * 1024 * 1024),
    )(a_p, h_p, w1, b1, w2, b2, gamma, beta, wp, bp)

    # TODO(synk): for graphs too large for VMEM residency, this needs a tiled
    # grid over node-row blocks with cross-tile BatchNorm partial sums and a
    # sparse (scalar-prefetch gather) aggregation instead of the dense A_norm.
    return out_p[:, :output_dim]


def init_params(key, input_dim, hidden_dim, output_dim, num_layers):
    params = {"layers": []}
    for i in range(num_layers):
        din = input_dim if i == 0 else hidden_dim
        key, k1, k2, k3, k4 = jax.random.split(key, 5)
        layer = {
            # Linear weights stored transposed relative to PyTorch (in, out) so
            # the kernel can do h @ W directly.
            "w1": jax.random.normal(k1, (din, hidden_dim), jnp.float32) * 0.1,
            "b1": jax.random.normal(k2, (1, hidden_dim), jnp.float32) * 0.1,
            "w2": jax.random.normal(k3, (hidden_dim, hidden_dim), jnp.float32) * 0.1,
            "b2": jax.random.normal(k4, (1, hidden_dim), jnp.float32) * 0.1,
            "gamma": jnp.ones((1, hidden_dim), jnp.float32),
            "beta": jnp.zeros((1, hidden_dim), jnp.float32),
        }
        params["layers"].append(layer)
    key, kp, kb = jax.random.split(key, 3)
    params["wp"] = jax.random.normal(kp, (hidden_dim, output_dim), jnp.float32) * 0.1
    params["bp"] = jax.random.normal(kb, (1, output_dim), jnp.float32) * 0.1
    return params


def build_graph(key, num_nodes, edge_prob=0.3):
    # Deterministic random directed graph as a dense row-normalized adjacency
    # for mean aggregation: A_norm[i, j] = 1/deg_in(i) for edge j -> i.
    adj = (jax.random.uniform(key, (num_nodes, num_nodes)) < edge_prob).astype(
        jnp.float32
    )
    adj = adj * (1.0 - jnp.eye(num_nodes, dtype=jnp.float32))  # no self loops
    deg = jnp.sum(adj, axis=1, keepdims=True)
    a_norm = jnp.where(deg > 0, adj / jnp.maximum(deg, 1.0), 0.0)
    return a_norm


if __name__ == "__main__":
    input_dim, hidden_dim, output_dim, num_layers = 8, 32, 4, 2
    num_nodes = 16

    key = jax.random.PRNGKey(0)
    k_graph, k_feat, k_param = jax.random.split(key, 3)

    a_norm = build_graph(k_graph, num_nodes)
    features = jax.random.normal(k_feat, (num_nodes, input_dim), jnp.float32)
    params = init_params(k_param, input_dim, hidden_dim, output_dim, num_layers)

    out = gin_model_forward(a_norm, features, params, num_layers)
    jax.block_until_ready(out)
    assert out.shape == (1, output_dim)
    print("KERNEL_OK")
</pallas_src>

<mosaic_0001>
module attributes {stable_mosaic.version = 11 : i64} {
  func.func @gin_fused_kernel(%arg0: memref<16x16xbf16, #tpu.memory_space<vmem>>, %arg1: memref<16x128xf32, #tpu.memory_space<vmem>>, %arg2: memref<2x128x128xf32, #tpu.memory_space<vmem>>, %arg3: memref<2x1x128xf32, #tpu.memory_space<vmem>>, %arg4: memref<2x128x128xf32, #tpu.memory_space<vmem>>, %arg5: memref<2x1x128xf32, #tpu.memory_space<vmem>>, %arg6: memref<2x1x128xf32, #tpu.memory_space<vmem>>, %arg7: memref<2x1x128xf32, #tpu.memory_space<vmem>>, %arg8: memref<128x128xf32, #tpu.memory_space<vmem>>, %arg9: memref<1x128xf32, #tpu.memory_space<vmem>>, %arg10: memref<1x128xf32, #tpu.memory_space<vmem>>) attributes {dimension_semantics = [], scalar_prefetch = 0 : i64, scratch_operands = 0 : i64, tpu.core_type = #tpu.core_type<tc>} {
    %c0 = arith.constant 0 : index
    %c0_0 = arith.constant 0 : index
    %0 = vector.load %arg0[%c0, %c0_0] : memref<16x16xbf16, #tpu.memory_space<vmem>>, vector<16x16xbf16>
    %c0_1 = arith.constant 0 : index
    %c0_2 = arith.constant 0 : index
    %1 = vector.load %arg1[%c0_1, %c0_2] : memref<16x128xf32, #tpu.memory_space<vmem>>, vector<16x128xf32>
    %2 = arith.truncf %1 : vector<16x128xf32> to vector<16x128xbf16>
    %cst = arith.constant dense<0.000000e+00> : vector<16x128xf32>
    %3 = tpu.matmul %0, %2, %cst {dimension_numbers = #tpu.dot_dimension_numbers<[1], [0], [0], [1], [0, 0, 1, 1], [], []>} : vector<16x16xbf16>, vector<16x128xbf16>, vector<16x128xf32> -> vector<16x128xf32>
    %4 = arith.addf %1, %3 : vector<16x128xf32>
    %c0_3 = arith.constant 0 : index
    %c0_4 = arith.constant 0 : index
    %c0_5 = arith.constant 0 : index
    %5 = vector.load %arg2[%c0_3, %c0_4, %c0_5] : memref<2x128x128xf32, #tpu.memory_space<vmem>>, vector<1x128x128xf32>
    %6 = vector.shape_cast %5 : vector<1x128x128xf32> to vector<128x128xf32>
    %cst_6 = arith.constant dense<0.000000e+00> : vector<16x128xf32>
    %7 = tpu.matmul %4, %6, %cst_6 {dimension_numbers = #tpu.dot_dimension_numbers<[1], [0], [0], [1], [0, 0, 1, 1], [], []>} : vector<16x128xf32>, vector<128x128xf32>, vector<16x128xf32> -> vector<16x128xf32>
    %c0_7 = arith.constant 0 : index
    %c0_8 = arith.constant 0 : index
    %c0_9 = arith.constant 0 : index
    %8 = vector.load %arg3[%c0_7, %c0_8, %c0_9] : memref<2x1x128xf32, #tpu.memory_space<vmem>>, vector<1x1x128xf32>
    %9 = vector.shape_cast %8 : vector<1x1x128xf32> to vector<1x128xf32>
    %10 = vector.broadcast %9 : vector<1x128xf32> to vector<16x128xf32>
    %11 = arith.addf %7, %10 : vector<16x128xf32>
    %cst_10 = arith.constant 0.000000e+00 : f32
    %12 = vector.broadcast %cst_10 : f32 to vector<16x128xf32>
    %13 = arith.maximumf %11, %12 : vector<16x128xf32>
    %c0_11 = arith.constant 0 : index
    %c0_12 = arith.constant 0 : index
    %c0_13 = arith.constant 0 : index
    %14 = vector.load %arg4[%c0_11, %c0_12, %c0_13] : memref<2x128x128xf32, #tpu.memory_space<vmem>>, vector<1x128x128xf32>
    %15 = vector.shape_cast %14 : vector<1x128x128xf32> to vector<128x128xf32>
    %cst_14 = arith.constant dense<0.000000e+00> : vector<16x128xf32>
    %16 = tpu.matmul %13, %15, %cst_14 {dimension_numbers = #tpu.dot_dimension_numbers<[1], [0], [0], [1], [0, 0, 1, 1], [], []>} : vector<16x128xf32>, vector<128x128xf32>, vector<16x128xf32> -> vector<16x128xf32>
    %c0_15 = arith.constant 0 : index
    %c0_16 = arith.constant 0 : index
    %c0_17 = arith.constant 0 : index
    %17 = vector.load %arg5[%c0_15, %c0_16, %c0_17] : memref<2x1x128xf32, #tpu.memory_space<vmem>>, vector<1x1x128xf32>
    %18 = vector.shape_cast %17 : vector<1x1x128xf32> to vector<1x128xf32>
    %19 = vector.broadcast %18 : vector<1x128xf32> to vector<16x128xf32>
    %20 = arith.addf %16, %19 : vector<16x128xf32>
    %cst_18 = arith.constant dense<0.000000e+00> : vector<128xf32>
    %21 = vector.multi_reduction <add>, %20, %cst_18 [0] : vector<16x128xf32> to vector<128xf32>
    %22 = vector.shape_cast %21 : vector<128xf32> to vector<1x128xf32>
    %cst_19 = arith.constant 6.250000e-02 : f32
    %23 = vector.broadcast %cst_19 : f32 to vector<1x128xf32>
    %24 = arith.mulf %22, %23 : vector<1x128xf32>
    %25 = vector.broadcast %24 : vector<1x128xf32> to vector<16x128xf32>
    %26 = arith.subf %20, %25 : vector<16x128xf32>
    %27 = arith.mulf %26, %26 : vector<16x128xf32>
    %cst_20 = arith.constant dense<0.000000e+00> : vector<128xf32>
    %28 = vector.multi_reduction <add>, %27, %cst_20 [0] : vector<16x128xf32> to vector<128xf32>
    %29 = vector.shape_cast %28 : vector<128xf32> to vector<1x128xf32>
    %cst_21 = arith.constant 6.250000e-02 : f32
    %30 = vector.broadcast %cst_21 : f32 to vector<1x128xf32>
    %31 = arith.mulf %29, %30 : vector<1x128xf32>
    %cst_22 = arith.constant 9.99999974E-6 : f32
    %32 = vector.broadcast %cst_22 : f32 to vector<1x128xf32>
    %33 = arith.addf %31, %32 : vector<1x128xf32>
    %34 = math.rsqrt %33 : vector<1x128xf32>
    %35 = vector.broadcast %34 : vector<1x128xf32> to vector<16x128xf32>
    %36 = arith.mulf %26, %35 : vector<16x128xf32>
    %c0_23 = arith.constant 0 : index
    %c0_24 = arith.constant 0 : index
    %c0_25 = arith.constant 0 : index
    %37 = vector.load %arg6[%c0_23, %c0_24, %c0_25] : memref<2x1x128xf32, #tpu.memory_space<vmem>>, vector<1x1x128xf32>
    %38 = vector.shape_cast %37 : vector<1x1x128xf32> to vector<1x128xf32>
    %39 = vector.broadcast %38 : vector<1x128xf32> to vector<16x128xf32>
    %40 = arith.mulf %36, %39 : vector<16x128xf32>
    %c0_26 = arith.constant 0 : index
    %c0_27 = arith.constant 0 : index
    %c0_28 = arith.constant 0 : index
    %41 = vector.load %arg7[%c0_26, %c0_27, %c0_28] : memref<2x1x128xf32, #tpu.memory_space<vmem>>, vector<1x1x128xf32>
    %42 = vector.shape_cast %41 : vector<1x1x128xf32> to vector<1x128xf32>
    %43 = vector.broadcast %42 : vector<1x128xf32> to vector<16x128xf32>
    %44 = arith.addf %40, %43 : vector<16x128xf32>
    %cst_29 = arith.constant 0.000000e+00 : f32
    %45 = vector.broadcast %cst_29 : f32 to vector<16x128xf32>
    %46 = arith.maximumf %44, %45 : vector<16x128xf32>
    %47 = arith.truncf %46 : vector<16x128xf32> to vector<16x128xbf16>
    %cst_30 = arith.constant dense<0.000000e+00> : vector<16x128xf32>
    %48 = tpu.matmul %0, %47, %cst_30 {dimension_numbers = #tpu.dot_dimension_numbers<[1], [0], [0], [1], [0, 0, 1, 1], [], []>} : vector<16x16xbf16>, vector<16x128xbf16>, vector<16x128xf32> -> vector<16x128xf32>
    %49 = arith.addf %46, %48 : vector<16x128xf32>
    %c1 = arith.constant 1 : index
    %c0_31 = arith.constant 0 : index
    %c0_32 = arith.constant 0 : index
    %50 = vector.load %arg2[%c1, %c0_31, %c0_32] : memref<2x128x128xf32, #tpu.memory_space<vmem>>, vector<1x128x128xf32>
    %51 = vector.shape_cast %50 : vector<1x128x128xf32> to vector<128x128xf32>
    %cst_33 = arith.constant dense<0.000000e+00> : vector<16x128xf32>
    %52 = tpu.matmul %49, %51, %cst_33 {dimension_numbers = #tpu.dot_dimension_numbers<[1], [0], [0], [1], [0, 0, 1, 1], [], []>} : vector<16x128xf32>, vector<128x128xf32>, vector<16x128xf32> -> vector<16x128xf32>
    %c1_34 = arith.constant 1 : index
    %c0_35 = arith.constant 0 : index
    %c0_36 = arith.constant 0 : index
    %53 = vector.load %arg3[%c1_34, %c0_35, %c0_36] : memref<2x1x128xf32, #tpu.memory_space<vmem>>, vector<1x1x128xf32>
    %54 = vector.shape_cast %53 : vector<1x1x128xf32> to vector<1x128xf32>
    %55 = vector.broadcast %54 : vector<1x128xf32> to vector<16x128xf32>
    %56 = arith.addf %52, %55 : vector<16x128xf32>
    %cst_37 = arith.constant 0.000000e+00 : f32
    %57 = vector.broadcast %cst_37 : f32 to vector<16x128xf32>
    %58 = arith.maximumf %56, %57 : vector<16x128xf32>
    %c1_38 = arith.constant 1 : index
    %c0_39 = arith.constant 0 : index
    %c0_40 = arith.constant 0 : index
    %59 = vector.load %arg4[%c1_38, %c0_39, %c0_40] : memref<2x128x128xf32, #tpu.memory_space<vmem>>, vector<1x128x128xf32>
    %60 = vector.shape_cast %59 : vector<1x128x128xf32> to vector<128x128xf32>
    %cst_41 = arith.constant dense<0.000000e+00> : vector<16x128xf32>
    %61 = tpu.matmul %58, %60, %cst_41 {dimension_numbers = #tpu.dot_dimension_numbers<[1], [0], [0], [1], [0, 0, 1, 1], [], []>} : vector<16x128xf32>, vector<128x128xf32>, vector<16x128xf32> -> vector<16x128xf32>
    %c1_42 = arith.constant 1 : index
    %c0_43 = arith.constant 0 : index
    %c0_44 = arith.constant 0 : index
    %62 = vector.load %arg5[%c1_42, %c0_43, %c0_44] : memref<2x1x128xf32, #tpu.memory_space<vmem>>, vector<1x1x128xf32>
    %63 = vector.shape_cast %62 : vector<1x1x128xf32> to vector<1x128xf32>
    %64 = vector.broadcast %63 : vector<1x128xf32> to vector<16x128xf32>
    %65 = arith.addf %61, %64 : vector<16x128xf32>
    %cst_45 = arith.constant dense<0.000000e+00> : vector<128xf32>
    %66 = vector.multi_reduction <add>, %65, %cst_45 [0] : vector<16x128xf32> to vector<128xf32>
    %67 = vector.shape_cast %66 : vector<128xf32> to vector<1x128xf32>
    %cst_46 = arith.constant 6.250000e-02 : f32
    %68 = vector.broadcast %cst_46 : f32 to vector<1x128xf32>
    %69 = arith.mulf %67, %68 : vector<1x128xf32>
    %70 = vector.broadcast %69 : vector<1x128xf32> to vector<16x128xf32>
    %71 = arith.subf %65, %70 : vector<16x128xf32>
    %72 = arith.mulf %71, %71 : vector<16x128xf32>
    %cst_47 = arith.constant dense<0.000000e+00> : vector<128xf32>
    %73 = vector.multi_reduction <add>, %72, %cst_47 [0] : vector<16x128xf32> to vector<128xf32>
    %74 = vector.shape_cast %73 : vector<128xf32> to vector<1x128xf32>
    %cst_48 = arith.constant 6.250000e-02 : f32
    %75 = vector.broadcast %cst_48 : f32 to vector<1x128xf32>
    %76 = arith.mulf %74, %75 : vector<1x128xf32>
    %cst_49 = arith.constant 9.99999974E-6 : f32
    %77 = vector.broadcast %cst_49 : f32 to vector<1x128xf32>
    %78 = arith.addf %76, %77 : vector<1x128xf32>
    %79 = math.rsqrt %78 : vector<1x128xf32>
    %80 = vector.broadcast %79 : vector<1x128xf32> to vector<16x128xf32>
    %81 = arith.mulf %71, %80 : vector<16x128xf32>
    %c1_50 = arith.constant 1 : index
    %c0_51 = arith.constant 0 : index
    %c0_52 = arith.constant 0 : index
    %82 = vector.load %arg6[%c1_50, %c0_51, %c0_52] : memref<2x1x128xf32, #tpu.memory_space<vmem>>, vector<1x1x128xf32>
    %83 = vector.shape_cast %82 : vector<1x1x128xf32> to vector<1x128xf32>
    %84 = vector.broadcast %83 : vector<1x128xf32> to vector<16x128xf32>
    %85 = arith.mulf %81, %84 : vector<16x128xf32>
    %c1_53 = arith.constant 1 : index
    %c0_54 = arith.constant 0 : index
    %c0_55 = arith.constant 0 : index
    %86 = vector.load %arg7[%c1_53, %c0_54, %c0_55] : memref<2x1x128xf32, #tpu.memory_space<vmem>>, vector<1x1x128xf32>
    %87 = vector.shape_cast %86 : vector<1x1x128xf32> to vector<1x128xf32>
    %88 = vector.broadcast %87 : vector<1x128xf32> to vector<16x128xf32>
    %89 = arith.addf %85, %88 : vector<16x128xf32>
    %cst_56 = arith.constant 0.000000e+00 : f32
    %90 = vector.broadcast %cst_56 : f32 to vector<16x128xf32>
    %91 = arith.maximumf %89, %90 : vector<16x128xf32>
    %cst_57 = arith.constant dense<0.000000e+00> : vector<128xf32>
    %92 = vector.multi_reduction <add>, %91, %cst_57 [0] : vector<16x128xf32> to vector<128xf32>
    %93 = vector.shape_cast %92 : vector<128xf32> to vector<1x128xf32>
    %cst_58 = arith.constant 6.250000e-02 : f32
    %94 = vector.broadcast %cst_58 : f32 to vector<1x128xf32>
    %95 = arith.mulf %93, %94 : vector<1x128xf32>
    %c0_59 = arith.constant 0 : index
    %c0_60 = arith.constant 0 : index
    %96 = vector.load %arg8[%c0_59, %c0_60] : memref<128x128xf32, #tpu.memory_space<vmem>>, vector<128x128xf32>
    %cst_61 = arith.constant dense<0.000000e+00> : vector<1x128xf32>
    %97 = tpu.matmul %95, %96, %cst_61 {dimension_numbers = #tpu.dot_dimension_numbers<[1], [0], [0], [1], [0, 0, 1, 1], [], []>} : vector<1x128xf32>, vector<128x128xf32>, vector<1x128xf32> -> vector<1x128xf32>
    %c0_62 = arith.constant 0 : index
    %c0_63 = arith.constant 0 : index
    %98 = vector.load %arg9[%c0_62, %c0_63] : memref<1x128xf32, #tpu.memory_space<vmem>>, vector<1x128xf32>
    %99 = arith.addf %97, %98 : vector<1x128xf32>
    %c0_64 = arith.constant 0 : index
    %c0_65 = arith.constant 0 : index
    %100 = vector.load %arg10[%c0_64, %c0_65] : memref<1x128xf32, #tpu.memory_space<vmem>>, vector<1x128xf32>
    tpu.vector_store %arg10[%c0_64, %c0_65], %99 {strides = array<i32>} : memref<1x128xf32, #tpu.memory_space<vmem>>, vector<1x128xf32>,
    return
  }
}

</mosaic_0001>

<llo_original>
// kernel: gin_model_forward.1
$region0: #{gin_model_forward.1}
  #allocation0 [shape = 'u32[]', space=smem, size = 0x4, offset = 0x4, fixed_abs, tag = 'smem constant byte address 0x4 - core index']
  #allocation1 [shape = 'u32[72,128]{1,0:T(1,128)}', space=vmem, size = 0x9000, scoped, tag = 'internal scratch']
  %s0 = inlined_call_operand.vmem [shape: bf16[16,16], index: 0, kind: input, shape index: {}]
  %s1 = inlined_call_operand.vmem [shape: f32[16,128], index: 1, kind: input, shape index: {}]
  %s2 = inlined_call_operand.vmem [shape: f32[2,128,128], index: 2, kind: input, shape index: {}]
  %s3 = inlined_call_operand.vmem [shape: f32[2,1,128], index: 3, kind: input, shape index: {}]
  %s4 = inlined_call_operand.vmem [shape: f32[2,128,128], index: 4, kind: input, shape index: {}]
  %s5 = inlined_call_operand.vmem [shape: f32[2,1,128], index: 5, kind: input, shape index: {}]
  %s6 = inlined_call_operand.vmem [shape: f32[2,1,128], index: 6, kind: input, shape index: {}]
  %s7 = inlined_call_operand.vmem [shape: f32[2,1,128], index: 7, kind: input, shape index: {}]
  %s8 = inlined_call_operand.vmem [shape: f32[128,128], index: 8, kind: input, shape index: {}]
  %s9 = inlined_call_operand.vmem [shape: f32[1,128], index: 9, kind: input, shape index: {}]
  %s10 = inlined_call_operand.hbm [shape: f32[1,128], index: 10, kind: output, shape index: {}]
  %s11 = sld [smem:[#allocation0]]
  $region50: #{gin_model_forward.1} parent=0
    _
  %s13 = ssub.s32 1, %s11
  %s14 = scalar_select 0, %s13, %s11
  $region1: #{gin_model_forward.1} parent=0
    #allocation2 [shape = 'u8[512]{0}', space=vmem, size = 0x400, scoped, tag = 'output window, operand 0, single buffered']
    #allocation3 [shape = 's32[1]{0}', space=sflag, size = 0x4, scoped, tag = 'scoped memory for gin_model_forward.1']
    %15 = vsyncpa [#allocation3], 0
    // Predicated region
    $region2: #{gin_model_forward.1} parent=1 // pred_check
      _
    $region3: #{gin_model_forward.1} parent=1 // pred_check_branch
      %17 = sbr.rel (0) target = $region5
    $region4: #{gin_model_forward.1} parent=1 // pred_region
      _
    $region5: #{gin_model_forward.1} parent=1 // pred_fallthru
      _
    // Predicated region
    $region6: #{gin_model_forward.1} parent=1 // pred_check
      _
    $region7: #{gin_model_forward.1} parent=1 // pred_check_branch
      %19 = sbr.rel (0) target = $region9
    $region8: #{gin_model_forward.1} parent=1 // pred_region
      _
    $region9: #{gin_model_forward.1} parent=1 // pred_fallthru
      _
    // Predicated region
    $region10: #{gin_model_forward.1} parent=1 // pred_check
      _
    $region11: #{gin_model_forward.1} parent=1 // pred_check_branch
      %21 = sbr.rel (0) target = $region13
    $region12: #{gin_model_forward.1} parent=1 // pred_region
      _
    $region13: #{gin_model_forward.1} parent=1 // pred_fallthru
      _
    // Predicated region
    $region14: #{gin_model_forward.1} parent=1 // pred_check
      _
    $region15: #{gin_model_forward.1} parent=1 // pred_check_branch
      %23 = sbr.rel (0) target = $region17
    $region16: #{gin_model_forward.1} parent=1 // pred_region
      _
    $region17: #{gin_model_forward.1} parent=1 // pred_fallthru
      _
    // Predicated region
    $region18: #{gin_model_forward.1} parent=1 // pred_check
      _
    $region19: #{gin_model_forward.1} parent=1 // pred_check_branch
      %25 = sbr.rel (0) target = $region21
    $region20: #{gin_model_forward.1} parent=1 // pred_region
      _
    $region21: #{gin_model_forward.1} parent=1 // pred_fallthru
      _
    // Predicated region
    $region22: #{gin_model_forward.1} parent=1 // pred_check
      _
    $region23: #{gin_model_forward.1} parent=1 // pred_check_branch
      %27 = sbr.rel (0) target = $region25
    $region24: #{gin_model_forward.1} parent=1 // pred_region
      _
    $region25: #{gin_model_forward.1} parent=1 // pred_fallthru
      _
    // Predicated region
    $region26: #{gin_model_forward.1} parent=1 // pred_check
      _
    $region27: #{gin_model_forward.1} parent=1 // pred_check_branch
      %29 = sbr.rel (0) target = $region29
    $region28: #{gin_model_forward.1} parent=1 // pred_region
      _
    $region29: #{gin_model_forward.1} parent=1 // pred_fallthru
      _
    // Predicated region
    $region30: #{gin_model_forward.1} parent=1 // pred_check
      _
    $region31: #{gin_model_forward.1} parent=1 // pred_check_branch
      %31 = sbr.rel (0) target = $region33
    $region32: #{gin_model_forward.1} parent=1 // pred_region
      _
    $region33: #{gin_model_forward.1} parent=1 // pred_fallthru
      _
    // Predicated region
    $region34: #{gin_model_forward.1} parent=1 // pred_check
      _
    $region35: #{gin_model_forward.1} parent=1 // pred_check_branch
      %33 = sbr.rel (0) target = $region37
    $region36: #{gin_model_forward.1} parent=1 // pred_region
      _
    $region37: #{gin_model_forward.1} parent=1 // pred_fallthru
      _
    // Predicated region
    $region38: #{gin_model_forward.1} parent=1 // pred_check
      _
    $region39: #{gin_model_forward.1} parent=1 // pred_check_branch
      %35 = sbr.rel (0) target = $region41
    $region40: #{gin_model_forward.1} parent=1 // pred_region
      _
    $region41: #{gin_model_forward.1} parent=1 // pred_fallthru
      _
    %v37 = vld [vmem:[%s0] sm:$0xf]
    %v38 = vld [vmem:[%s0 + $0x4] sm:$0xf]
    %v39 = vld [vmem:[%s1] sm:$0xff]
    %v40 = vld [vmem:[%s1 + $0x8] sm:$0xff]
    %v41 = vpack.c.bf16 %v40, %v39
    %v44 = vunpack.c.l.b16 %v37
    %v45 = vunpack.c.l.b16 %v38
    %v46 = vpack.c.b16 %v45, %v44
    %vm47 = vcmask 130048
    %v49 = vsel %vm47, %v46, 0
    %51 = vmatpush.bf16.msra.mxu0 0
    %52 = vmatpush.bf16.msra.mxu0 0
    %53 = vmatpush.bf16.msra.mxu0 0
    %54 = vmatpush.bf16.msra.mxu0 0
    %55 = vmatpush.bf16.msra.mxu0 0
    %56 = vmatpush.bf16.msra.mxu0 0
    %57 = vmatpush.bf16.msra.mxu0 0
    %58 = vmatpush.bf16.msra.mxu0 %v41
    %59 = vmatmul.bf16.gmra.mxu0 %v49
    %v60 = vpop.f32.mrf.mxu0
    %v61 = vadd.f32 0.0, %v60
    %v62 = vpop.f32.mrf.mxu0
    %v63 = vadd.f32 0.0, %v62
    %64 = vdwg.mxu0
    %v65 = vadd.f32 %v39, %v61
    %v66 = vadd.f32 %v40, %v63
    %v67 = vld [vmem:[%s2] sm:$0xff]
    %v68 = vld [vmem:[%s2 + $0x8] sm:$0xff]
    %v69 = vld [vmem:[%s2 + $0x10] sm:$0xff]
    %v70 = vld [vmem:[%s2 + $0x18] sm:$0xff]
    %v71 = vld [vmem:[%s2 + $0x20] sm:$0xff]
    %v72 = vld [vmem:[%s2 + $0x28] sm:$0xff]
    %v73 = vld [vmem:[%s2 + $0x30] sm:$0xff]
    %v74 = vld [vmem:[%s2 + $0x38] sm:$0xff]
    %v75 = vld [vmem:[%s2 + $0x40] sm:$0xff]
    %v76 = vld [vmem:[%s2 + $0x48] sm:$0xff]
    %v77 = vld [vmem:[%s2 + $0x50] sm:$0xff]
    %v78 = vld [vmem:[%s2 + $0x58] sm:$0xff]
    %v79 = vld [vmem:[%s2 + $0x60] sm:$0xff]
    %v80 = vld [vmem:[%s2 + $0x68] sm:$0xff]
    %v81 = vld [vmem:[%s2 + $0x70] sm:$0xff]
    %v82 = vld [vmem:[%s2 + $0x78] sm:$0xff]
    %v83 = vld [vmem:[%s3] sm:$0x1]
    %v85 = vperm.slane %v83, 0
    %87 = vmatpush.msra.mxu0 %v82
    %88 = vmatpush.msra.mxu0 %v81
    %89 = vmatpush.msra.mxu0 %v80
    %90 = vmatpush.msra.mxu0 %v79
    %91 = vmatpush.msra.mxu0 %v78
    %92 = vmatpush.msra.mxu0 %v77
    %93 = vmatpush.msra.mxu0 %v76
    %94 = vmatpush.msra.mxu0 %v75
    %95 = vmatpush.msra.mxu0 %v74
    %96 = vmatpush.msra.mxu0 %v73
    %97 = vmatpush.msra.mxu0 %v72
    %98 = vmatpush.msra.mxu0 %v71
    %99 = vmatpush.msra.mxu0 %v70
    %100 = vmatpush.msra.mxu0 %v69
    %101 = vmatpush.msra.mxu0 %v68
    %102 = vmatpush.msra.mxu0 %v67
    %103 = vmatmul.f32.gmra.mxu0 %v65
    %v104 = vpop.f32.mrf.mxu0
    %v105 = vadd.f32 %v85, %v104
    %106 = vmatmul.f32.gmra.mxu0 %v66
    %v107 = vpop.f32.mrf.mxu0
    %v108 = vadd.f32 %v85, %v107
    %109 = vdwg.mxu0
    %v110 = vmax.f32 %v105, 0.0
    %v111 = vmax.f32 %v108, 0.0
    %v112 = vld [vmem:[%s4] sm:$0xff]
    %v113 = vld [vmem:[%s4 + $0x8] sm:$0xff]
    %v114 = vld [vmem:[%s4 + $0x10] sm:$0xff]
    %v115 = vld [vmem:[%s4 + $0x18] sm:$0xff]
    %v116 = vld [vmem:[%s4 + $0x20] sm:$0xff]
    %v117 = vld [vmem:[%s4 + $0x28] sm:$0xff]
    %v118 = vld [vmem:[%s4 + $0x30] sm:$0xff]
    %v119 = vld [vmem:[%s4 + $0x38] sm:$0xff]
    %v120 = vld [vmem:[%s4 + $0x40] sm:$0xff]
    %v121 = vld [vmem:[%s4 + $0x48] sm:$0xff]
    %v122 = vld [vmem:[%s4 + $0x50] sm:$0xff]
    %v123 = vld [vmem:[%s4 + $0x58] sm:$0xff]
    %v124 = vld [vmem:[%s4 + $0x60] sm:$0xff]
    %v125 = vld [vmem:[%s4 + $0x68] sm:$0xff]
    %v126 = vld [vmem:[%s4 + $0x70] sm:$0xff]
    %v127 = vld [vmem:[%s4 + $0x78] sm:$0xff]
    %v128 = vld [vmem:[%s5] sm:$0x1]
    %v130 = vperm.slane %v128, 0
    %132 = vmatpush.msra.mxu0 %v127
    %133 = vmatpush.msra.mxu0 %v126
    %134 = vmatpush.msra.mxu0 %v125
    %135 = vmatpush.msra.mxu0 %v124
    %136 = vmatpush.msra.mxu0 %v123
    %137 = vmatpush.msra.mxu0 %v122
    %138 = vmatpush.msra.mxu0 %v121
    %139 = vmatpush.msra.mxu0 %v120
    %140 = vmatpush.msra.mxu0 %v119
    %141 = vmatpush.msra.mxu0 %v118
    %142 = vmatpush.msra.mxu0 %v117
    %143 = vmatpush.msra.mxu0 %v116
    %144 = vmatpush.msra.mxu0 %v115
    %145 = vmatpush.msra.mxu0 %v114
    %146 = vmatpush.msra.mxu0 %v113
    %147 = vmatpush.msra.mxu0 %v112
    %148 = vmatmul.f32.gmra.mxu0 %v110
    %v149 = vpop.f32.mrf.mxu0
    %v150 = vadd.f32 %v130, %v149
    %151 = vmatmul.f32.gmra.mxu0 %v111
    %v152 = vpop.f32.mrf.mxu0
    %v153 = vadd.f32 %v130, %v152
    %154 = vdwg.mxu0
    %v155 = vadd.f32 %v150, %v153
    %v156 = vrot.slane %v155, 4
    %v157 = vadd.f32 %v155, %v156
    %v158 = vrot.slane %v157, 2
    %v159 = vadd.f32 %v157, %v158
    %v160 = vrot.slane %v159, 1
    %v161 = vadd.f32 %v159, %v160
    %v162 = vmul.f32 %v161, 0.0625
    %v163 = vsub.f32 %v150, %v162
    %v164 = vsub.f32 %v153, %v162
    %v165 = vmul.f32 %v163, %v163
    %v166 = vmul.f32 %v164, %v164
    %v167 = vadd.f32 %v165, %v166
    %v168 = vrot.slane %v167, 4
    %v169 = vadd.f32 %v167, %v168
    %v170 = vrot.slane %v169, 2
    %v171 = vadd.f32 %v169, %v170
    %v172 = vrot.slane %v171, 1
    %v173 = vadd.f32 %v171, %v172
    %v174 = vmul.f32 %v173, 0.0625
    %v175 = vadd.f32 %v174, 1e-05
    %v176 = vrsqrt.pop %v175
    %v177 = vmul.f32 %v176, %v175
    %v178 = vmul.f32 %v177, %v176
    %v179 = vmul.f32 0.5, %v178
    %v180 = vsub.f32 1.5, %v179
    %v181 = vmul.f32 %v176, %v180
    %vm182 = vweird.f32 %v175
    %vm183 = vweird.f32 %v176
    %vm184 = vmor %vm182, %vm183
    %v185 = vsel %vm184, %v176, %v181
    %v186 = vmul.f32 %v163, %v185
    %v187 = vmul.f32 %v164, %v185
    %v188 = vld [vmem:[%s6] sm:$0x1]
    %v190 = vperm.slane %v188, 0
    %v192 = vmul.f32 %v186, %v190
    %v193 = vmul.f32 %v187, %v190
    %v194 = vld [vmem:[%s7] sm:$0x1]
    %v196 = vperm.slane %v194, 0
    %v198 = vadd.f32 %v192, %v196
    %v199 = vadd.f32 %v193, %v196
    %v200 = vmax.f32 %v198, 0.0
    %v201 = vmax.f32 %v199, 0.0
    %v202 = vpack.c.bf16 %v201, %v200
    %203 = vmatpush.bf16.msra.mxu0 0
    %204 = vmatpush.bf16.msra.mxu0 0
    %205 = vmatpush.bf16.msra.mxu0 0
    %206 = vmatpush.bf16.msra.mxu0 0
    %207 = vmatpush.bf16.msra.mxu0 0
    %208 = vmatpush.bf16.msra.mxu0 0
    %209 = vmatpush.bf16.msra.mxu0 0
    %210 = vmatpush.bf16.msra.mxu0 %v202
    %211 = vmatmul.bf16.gmra.mxu0 %v49
    %v212 = vpop.f32.mrf.mxu0
    %v213 = vadd.f32 0.0, %v212
    %v214 = vpop.f32.mrf.mxu0
    %v215 = vadd.f32 0.0, %v214
    %216 = vdwg.mxu0
    %v217 = vadd.f32 %v200, %v213
    %v218 = vadd.f32 %v201, %v215
    %s219 = scalar_lea.vmem %s2, 128
    %v220 = vld [vmem:[%s219] sm:$0xff]
    %v221 = vld [vmem:[%s219 + $0x8] sm:$0xff]
    %v222 = vld [vmem:[%s219 + $0x10] sm:$0xff]
    %v223 = vld [vmem:[%s219 + $0x18] sm:$0xff]
    %v224 = vld [vmem:[%s219 + $0x20] sm:$0xff]
    %v225 = vld [vmem:[%s219 + $0x28] sm:$0xff]
    %v226 = vld [vmem:[%s219 + $0x30] sm:$0xff]
    %v227 = vld [vmem:[%s219 + $0x38] sm:$0xff]
    %v228 = vld [vmem:[%s219 + $0x40] sm:$0xff]
    %v229 = vld [vmem:[%s219 + $0x48] sm:$0xff]
    %v230 = vld [vmem:[%s219 + $0x50] sm:$0xff]
    %v231 = vld [vmem:[%s219 + $0x58] sm:$0xff]
    %v232 = vld [vmem:[%s219 + $0x60] sm:$0xff]
    %v233 = vld [vmem:[%s219 + $0x68] sm:$0xff]
    %v234 = vld [vmem:[%s219 + $0x70] sm:$0xff]
    %v235 = vld [vmem:[%s219 + $0x78] sm:$0xff]
    %s236 = scalar_lea.vmem %s3, 1
    %v237 = vld [vmem:[%s236] sm:$0x1]
    %v239 = vperm.slane %v237, 0
    %241 = vmatpush.msra.mxu0 %v235
    %242 = vmatpush.msra.mxu0 %v234
    %243 = vmatpush.msra.mxu0 %v233
    %244 = vmatpush.msra.mxu0 %v232
    %245 = vmatpush.msra.mxu0 %v231
    %246 = vmatpush.msra.mxu0 %v230
    %247 = vmatpush.msra.mxu0 %v229
    %248 = vmatpush.msra.mxu0 %v228
    %249 = vmatpush.msra.mxu0 %v227
    %250 = vmatpush.msra.mxu0 %v226
    %251 = vmatpush.msra.mxu0 %v225
    %252 = vmatpush.msra.mxu0 %v224
    %253 = vmatpush.msra.mxu0 %v223
    %254 = vmatpush.msra.mxu0 %v222
    %255 = vmatpush.msra.mxu0 %v221
    %256 = vmatpush.msra.mxu0 %v220
    %257 = vmatmul.f32.gmra.mxu0 %v217
    %v258 = vpop.f32.mrf.mxu0
    %v259 = vadd.f32 %v239, %v258
    %260 = vmatmul.f32.gmra.mxu0 %v218
    %v261 = vpop.f32.mrf.mxu0
    %v262 = vadd.f32 %v239, %v261
    %263 = vdwg.mxu0
    %v264 = vmax.f32 %v259, 0.0
    %v265 = vmax.f32 %v262, 0.0
    %s266 = scalar_lea.vmem %s4, 128
    %v267 = vld [vmem:[%s266] sm:$0xff]
    %v268 = vld [vmem:[%s266 + $0x8] sm:$0xff]
    %v269 = vld [vmem:[%s266 + $0x10] sm:$0xff]
    %v270 = vld [vmem:[%s266 + $0x18] sm:$0xff]
    %v271 = vld [vmem:[%s266 + $0x20] sm:$0xff]
    %v272 = vld [vmem:[%s266 + $0x28] sm:$0xff]
    %v273 = vld [vmem:[%s266 + $0x30] sm:$0xff]
    %v274 = vld [vmem:[%s266 + $0x38] sm:$0xff]
    %v275 = vld [vmem:[%s266 + $0x40] sm:$0xff]
    %v276 = vld [vmem:[%s266 + $0x48] sm:$0xff]
    %v277 = vld [vmem:[%s266 + $0x50] sm:$0xff]
    %v278 = vld [vmem:[%s266 + $0x58] sm:$0xff]
    %v279 = vld [vmem:[%s266 + $0x60] sm:$0xff]
    %v280 = vld [vmem:[%s266 + $0x68] sm:$0xff]
    %v281 = vld [vmem:[%s266 + $0x70] sm:$0xff]
    %v282 = vld [vmem:[%s266 + $0x78] sm:$0xff]
    %s283 = scalar_lea.vmem %s5, 1
    %v284 = vld [vmem:[%s283] sm:$0x1]
    %v286 = vperm.slane %v284, 0
    %288 = vmatpush.msra.mxu0 %v282
    %289 = vmatpush.msra.mxu0 %v281
    %290 = vmatpush.msra.mxu0 %v280
    %291 = vmatpush.msra.mxu0 %v279
    %292 = vmatpush.msra.mxu0 %v278
    %293 = vmatpush.msra.mxu0 %v277
    %294 = vmatpush.msra.mxu0 %v276
    %295 = vmatpush.msra.mxu0 %v275
    %296 = vmatpush.msra.mxu0 %v274
    %297 = vmatpush.msra.mxu0 %v273
    %298 = vmatpush.msra.mxu0 %v272
    %299 = vmatpush.msra.mxu0 %v271
    %300 = vmatpush.msra.mxu0 %v270
    %301 = vmatpush.msra.mxu0 %v269
    %302 = vmatpush.msra.mxu0 %v268
    %303 = vmatpush.msra.mxu0 %v267
    %304 = vmatmul.f32.gmra.mxu0 %v264
    %v305 = vpop.f32.mrf.mxu0
    %v306 = vadd.f32 %v286, %v305
    %307 = vmatmul.f32.gmra.mxu0 %v265
    %v308 = vpop.f32.mrf.mxu0
    %v309 = vadd.f32 %v286, %v308
    %310 = vdwg.mxu0
    %v311 = vadd.f32 %v306, %v309
    %v312 = vrot.slane %v311, 4
    %v313 = vadd.f32 %v311, %v312
    %v314 = vrot.slane %v313, 2
    %v315 = vadd.f32 %v313, %v314
    %v316 = vrot.slane %v315, 1
    %v317 = vadd.f32 %v315, %v316
    %v318 = vmul.f32 %v317, 0.0625
    %v319 = vsub.f32 %v306, %v318
    %v320 = vsub.f32 %v309, %v318
    %v321 = vmul.f32 %v319, %v319
    %v322 = vmul.f32 %v320, %v320
    %v323 = vadd.f32 %v321, %v322
    %v324 = vrot.slane %v323, 4
    %v325 = vadd.f32 %v323, %v324
    %v326 = vrot.slane %v325, 2
    %v327 = vadd.f32 %v325, %v326
    %v328 = vrot.slane %v327, 1
    %v329 = vadd.f32 %v327, %v328
    %v330 = vmul.f32 %v329, 0.0625
    %v331 = vadd.f32 %v330, 1e-05
    %v332 = vrsqrt.pop %v331
    %v333 = vmul.f32 %v332, %v331
    %v334 = vmul.f32 %v333, %v332
    %v335 = vmul.f32 0.5, %v334
    %v336 = vsub.f32 1.5, %v335
    %v337 = vmul.f32 %v332, %v336
    %vm338 = vweird.f32 %v331
    %vm339 = vweird.f32 %v332
    %vm340 = vmor %vm338, %vm339
    %v341 = vsel %vm340, %v332, %v337
    %v342 = vmul.f32 %v319, %v341
    %v343 = vmul.f32 %v320, %v341
    %s344 = scalar_lea.vmem %s6, 1
    %v345 = vld [vmem:[%s344] sm:$0x1]
    %v347 = vperm.slane %v345, 0
    %v349 = vmul.f32 %v342, %v347
    %v350 = vmul.f32 %v343, %v347
    %s351 = scalar_lea.vmem %s7, 1
    %v352 = vld [vmem:[%s351] sm:$0x1]
    %v354 = vperm.slane %v352, 0
    %v356 = vadd.f32 %v349, %v354
    %v357 = vadd.f32 %v350, %v354
    %v358 = vmax.f32 %v356, 0.0
    %v359 = vmax.f32 %v357, 0.0
    %v360 = vadd.f32 %v358, %v359
    %v361 = vrot.slane %v360, 4
    %v362 = vadd.f32 %v360, %v361
    %v363 = vrot.slane %v362, 2
    %v364 = vadd.f32 %v362, %v363
    %v365 = vrot.slane %v364, 1
    %v366 = vadd.f32 %v364, %v365
    %v367 = vmul.f32 %v366, 0.0625
    %v368 = vld [vmem:[%s8] sm:$0xff]
    %v369 = vld [vmem:[%s8 + $0x8] sm:$0xff]
    %v370 = vld [vmem:[%s8 + $0x10] sm:$0xff]
    %v371 = vld [vmem:[%s8 + $0x18] sm:$0xff]
    %v372 = vld [vmem:[%s8 + $0x20] sm:$0xff]
    %v373 = vld [vmem:[%s8 + $0x28] sm:$0xff]
    %v374 = vld [vmem:[%s8 + $0x30] sm:$0xff]
    %v375 = vld [vmem:[%s8 + $0x38] sm:$0xff]
    %v376 = vld [vmem:[%s8 + $0x40] sm:$0xff]
    %v377 = vld [vmem:[%s8 + $0x48] sm:$0xff]
    %v378 = vld [vmem:[%s8 + $0x50] sm:$0xff]
    %v379 = vld [vmem:[%s8 + $0x58] sm:$0xff]
    %v380 = vld [vmem:[%s8 + $0x60] sm:$0xff]
    %v381 = vld [vmem:[%s8 + $0x68] sm:$0xff]
    %v382 = vld [vmem:[%s8 + $0x70] sm:$0xff]
    %v383 = vld [vmem:[%s8 + $0x78] sm:$0xff]
    %v384 = vld [vmem:[%s9] sm:$0x1]
    %385 = vmatpush.msra.mxu0 %v383
    %386 = vmatpush.msra.mxu0 %v382
    %387 = vmatpush.msra.mxu0 %v381
    %388 = vmatpush.msra.mxu0 %v380
    %389 = vmatpush.msra.mxu0 %v379
    %390 = vmatpush.msra.mxu0 %v378
    %391 = vmatpush.msra.mxu0 %v377
    %392 = vmatpush.msra.mxu0 %v376
    %393 = vmatpush.msra.mxu0 %v375
    %394 = vmatpush.msra.mxu0 %v374
    %395 = vmatpush.msra.mxu0 %v373
    %396 = vmatpush.msra.mxu0 %v372
    %397 = vmatpush.msra.mxu0 %v371
    %398 = vmatpush.msra.mxu0 %v370
    %399 = vmatpush.msra.mxu0 %v369
    %400 = vmatpush.msra.mxu0 %v368
    %401 = vmatmul.f32.gmra.mxu0 %v367
    %v402 = vpop.f32.mrf.mxu0
    %v403 = vadd.f32 %v384, %v402
    %404 = vdwg.mxu0
    %405 = vst [vmem:[#allocation2] sm:$0x1] %v403
    // Predicated region
    $region42: #{gin_model_forward.1} parent=1 // pred_check
      _
    $region43: #{gin_model_forward.1} parent=1 // pred_check_branch
      %407 = sbr.rel (0) target = $region45
    $region44: #{gin_model_forward.1} parent=1 // pred_region
      %409 = vsyncadd [#allocation3], 0
      %s411 = sshll.u32 [#allocation2], 4
      %s412 = int_to_ptr.vmem [resolvable:$true] %s411
      %s413 = sshll.u32 %s10, 4
      %s414 = int_to_ptr.hbm [resolvable:$true] %s413
      %416 = dma.vmem_to_hbm [thread:$0]  %s412, 16, %s414, [#allocation3]
    $region45: #{gin_model_forward.1} parent=1 // pred_fallthru
      _
    // Predicated region
    $region46: #{gin_model_forward.1} parent=1 // pred_check
      _
    $region47: #{gin_model_forward.1} parent=1 // pred_check_branch
      %418 = sbr.rel (0) target = $region49
    $region48: #{gin_model_forward.1} parent=1 // pred_region
      %420 = dma.done [#allocation3], 16
    $region49: #{gin_model_forward.1} parent=1 // pred_fallthru
      _
    %421 = vsyncpa [#allocation3], 1

</llo_original>
